<compile_context>
chip_gen: v7x
topology: tpu7x:2x2x1
jax: 0.10.0
libtpu: 0.0.40
codegen_flags: <defaults>
</compile_context>

<pallas_src>
import functools

import jax
import jax.numpy as jnp
from jax.experimental import pallas as pl
from jax.experimental.pallas import tpu as pltpu


# ----------------------------------------------------------------------------
# Pallas kernel: one row-tile / K-tile step of  out = A_norm @ emb
# ----------------------------------------------------------------------------
def _spmm_kernel(adj_ref, emb_ref, out_ref, acc_ref):
    k = pl.program_id(1)

    @pl.when(k == 0)
    def _init():
        acc_ref[...] = jnp.zeros_like(acc_ref)

    # adj tile is bf16 (HBM-traffic saving); compute/accumulate in f32.
    acc_ref[...] += jnp.dot(
        adj_ref[...].astype(jnp.float32),
        emb_ref[...],
        preferred_element_type=jnp.float32,
    )

    @pl.when(k == pl.num_programs(1) - 1)
    def _finalize():
        out_ref[...] = acc_ref[...]


def _round_up(x, m):
    return (x + m - 1) // m * m


def _pick_tile(n_padded, cap=512):
    for t in (512, 256, 128):
        if t <= cap and n_padded % t == 0:
            return t
    return 128


def _make_spmm(n_padded, d_padded, tm, tk):
    grid = (n_padded // tm, n_padded // tk)
    return pl.pallas_call(
        _spmm_kernel,
        out_shape=jax.ShapeDtypeStruct((n_padded, d_padded), jnp.float32),
        grid_spec=pltpu.PrefetchScalarGridSpec(
            num_scalar_prefetch=0,
            grid=grid,
            in_specs=[
                pl.BlockSpec((tm, tk), lambda i, k: (i, k)),       # adj tile (bf16)
                pl.BlockSpec((tk, d_padded), lambda i, k: (k, 0)),  # emb K-tile (f32)
            ],
            out_specs=pl.BlockSpec((tm, d_padded), lambda i, k: (i, 0)),
            scratch_shapes=[pltpu.VMEM((tm, d_padded), jnp.float32)],
        ),
        compiler_params=pltpu.CompilerParams(
            # row tiles independent -> megacore-shardable on v7x; K is reduction.
            dimension_semantics=("parallel", "arbitrary"),
            # Safe on all generations (v7x has 64 MiB physical VMEM); plenty of
            # headroom for double-buffered (TM,TK) bf16 adj + (TK,128) f32 emb.
            vmem_limit_bytes=48 * 1024 * 1024,
        ),
    )


# ----------------------------------------------------------------------------
# Layer loop wrapper: pads to lane-dense shapes, runs L propagation layers,
# averages layer outputs (emb0 included), slices padding back off.
# ----------------------------------------------------------------------------
def lightgcn_propagate(adj, emb0, *, num_layers):
    N, D = emb0.shape
    d_padded = _round_up(D, 128)
    n_padded = _round_up(N, 128)
    tile = _pick_tile(n_padded)

    adj_p = jnp.pad(adj.astype(jnp.bfloat16),
                    ((0, n_padded - N), (0, n_padded - N)))
    emb_p = jnp.pad(emb0.astype(jnp.float32),
                    ((0, n_padded - N), (0, d_padded - D)))

    spmm = _make_spmm(n_padded, d_padded, tile, tile)

    emb = emb_p
    acc = emb_p                      # layer-0 contribution
    for _ in range(num_layers):      # small static L -> unrolled chain of calls
        emb = spmm(adj_p, emb)
        acc = acc + emb
    final = acc * (1.0 / float(num_layers + 1))
    return final[:N, :D]


# ----------------------------------------------------------------------------
# Glue: symmetric normalized adjacency  A_norm = D^{-1/2} (A ∪ A^T) D^{-1/2}
# Built once per graph (cached in the encoder) directly in bf16.
# ----------------------------------------------------------------------------
def build_normalized_adj(edge_index, num_nodes, dtype=jnp.bfloat16):
    row, col = edge_index[0], edge_index[1]
    adj = jnp.zeros((num_nodes, num_nodes), dtype=jnp.float32)
    adj = adj.at[row, col].set(1.0)
    adj = jnp.maximum(adj, adj.T)                      # to_symmetric (binary)
    deg = adj.sum(axis=1)
    deg_inv_sqrt = jnp.where(deg > 0.0,
                             jax.lax.rsqrt(jnp.maximum(deg, 1.0)),
                             0.0)                      # isolated nodes -> 0
    norm = deg_inv_sqrt[:, None] * adj * deg_inv_sqrt[None, :]
    return norm.astype(dtype)


class LightGCNEncoder:
    """JAX/Pallas port of the PyTorch LightGCNEncoder forward pass."""

    def __init__(self, num_users, num_items, embedding_dim, num_layers, key):
        self.num_users = num_users
        self.num_items = num_items
        self.embedding_dim = embedding_dim
        self.num_layers = num_layers
        ku, ki = jax.random.split(key)
        # nn.init.normal_(..., std=0.1)
        self.user_embedding = 0.1 * jax.random.normal(
            ku, (num_users, embedding_dim), dtype=jnp.float32)
        self.item_embedding = 0.1 * jax.random.normal(
            ki, (num_items, embedding_dim), dtype=jnp.float32)
        self._adj_cache = None   # adjacency is static per graph; cache it
        self._propagate = jax.jit(
            functools.partial(lightgcn_propagate, num_layers=num_layers))

    def __call__(self, edge_index):
        N = self.num_users + self.num_items
        if self._adj_cache is None:
            self._adj_cache = build_normalized_adj(edge_index, N)
        emb0 = jnp.concatenate([self.user_embedding, self.item_embedding], axis=0)
        final = self._propagate(self._adj_cache, emb0)
        return final[: self.num_users], final[self.num_users:]


# ----------------------------------------------------------------------------
# Pure-JAX reference for correctness check
# ----------------------------------------------------------------------------
def _reference(adj_f32, emb0, num_layers, num_users):
    embs = [emb0]
    emb = emb0
    for _ in range(num_layers):
        emb = adj_f32 @ emb
        embs.append(emb)
    final = jnp.stack(embs, 0).mean(0)
    return final[:num_users], final[num_users:]


if __name__ == "__main__":
    num_users, num_items = 48, 80          # N = 128
    embedding_dim = 32
    num_layers = 3
    N = num_users + num_items

    key = jax.random.PRNGKey(0)
    enc = LightGCNEncoder(num_users, num_items, embedding_dim, num_layers, key)

    # Deterministic bipartite user->item edges (unique pairs), indices into
    # the combined node set of size N, as expected by the PyTorch module.
    edges = []
    for u in range(num_users):
        for k in range(3):
            i = (u * 3 + k) % num_items
            edges.append((u, num_users + i))
    edge_index = jnp.array(edges, dtype=jnp.int32).T   # [2, num_edges]

    user_out, item_out = enc(edge_index)
    user_out = jax.block_until_ready(user_out)
    item_out = jax.block_until_ready(item_out)

    # Verify against pure-JAX reference (same bf16-rounded adjacency, f32 math).
    adj_bf16 = build_normalized_adj(edge_index, N)
    adj_f32 = adj_bf16.astype(jnp.float32)
    emb0 = jnp.concatenate([enc.user_embedding, enc.item_embedding], axis=0)
    ref_u, ref_i = _reference(adj_f32, emb0, num_layers, num_users)
    assert jnp.allclose(user_out, ref_u, atol=1e-5, rtol=1e-4)
    assert jnp.allclose(item_out, ref_i, atol=1e-5, rtol=1e-4)
    assert user_out.shape == (num_users, embedding_dim)
    assert item_out.shape == (num_items, embedding_dim)

    print("KERNEL_OK")
</pallas_src>

<mosaic_0001>
module attributes {stable_mosaic.version = 11 : i64} {
  func.func @_spmm_kernel(%arg0: i32, %arg1: i32, %arg2: memref<128x128xbf16, #tpu.memory_space<vmem>>, %arg3: memref<128x128xf32, #tpu.memory_space<vmem>>, %arg4: memref<128x128xf32, #tpu.memory_space<vmem>>, %arg5: memref<128x128xf32, #tpu.memory_space<vmem>>) attributes {dimension_semantics = [#tpu.dimension_semantics<parallel>, #tpu.dimension_semantics<arbitrary>], iteration_bounds = array<i64: 1, 1>, scalar_prefetch = 0 : i64, scratch_operands = 1 : i64, tpu.core_type = #tpu.core_type<tc>, window_params = [{transform_indices = @transform_0, window_bounds = array<i64: 128, 128>}, {transform_indices = @transform_1, window_bounds = array<i64: 128, 128>}, {transform_indices = @transform_2, window_bounds = array<i64: 128, 128>}]} {
    %c0_i32 = arith.constant 0 : i32
    %0 = arith.cmpi eq, %arg1, %c0_i32 : i32
    %1 = arith.extui %0 : i1 to i32
    %c0_i32_0 = arith.constant 0 : i32
    %2 = arith.cmpi ne, %1, %c0_i32_0 : i32
    scf.if %2 {
      %cst_10 = arith.constant 0.000000e+00 : f32
      %13 = vector.broadcast %cst_10 : f32 to vector<128x128xf32>
      %c0_11 = arith.constant 0 : index
      %c0_12 = arith.constant 0 : index
      %14 = vector.load %arg5[%c0_11, %c0_12] : memref<128x128xf32, #tpu.memory_space<vmem>>, vector<128x128xf32>
      tpu.vector_store %arg5[%c0_11, %c0_12], %13 {strides = array<i32>} : memref<128x128xf32, #tpu.memory_space<vmem>>, vector<128x128xf32>,
    } else {
    }
    %c0 = arith.constant 0 : index
    %c0_1 = arith.constant 0 : index
    %3 = vector.load %arg5[%c0, %c0_1] : memref<128x128xf32, #tpu.memory_space<vmem>>, vector<128x128xf32>
    %c0_2 = arith.constant 0 : index
    %c0_3 = arith.constant 0 : index
    %4 = vector.load %arg2[%c0_2, %c0_3] : memref<128x128xbf16, #tpu.memory_space<vmem>>, vector<128x128xbf16>
    %5 = arith.extf %4 : vector<128x128xbf16> to vector<128x128xf32>
    %c0_4 = arith.constant 0 : index
    %c0_5 = arith.constant 0 : index
    %6 = vector.load %arg3[%c0_4, %c0_5] : memref<128x128xf32, #tpu.memory_space<vmem>>, vector<128x128xf32>
    %cst = arith.constant dense<0.000000e+00> : vector<128x128xf32>
    %7 = tpu.matmul %5, %6, %cst {dimension_numbers = #tpu.dot_dimension_numbers<[1], [0], [0], [1], [0, 0, 1, 1], [], []>} : vector<128x128xf32>, vector<128x128xf32>, vector<128x128xf32> -> vector<128x128xf32>
    %8 = arith.addf %3, %7 : vector<128x128xf32>
    %c0_6 = arith.constant 0 : index
    %c0_7 = arith.constant 0 : index
    %9 = vector.load %arg5[%c0_6, %c0_7] : memref<128x128xf32, #tpu.memory_space<vmem>>, vector<128x128xf32>
    tpu.vector_store %arg5[%c0_6, %c0_7], %8 {strides = array<i32>} : memref<128x128xf32, #tpu.memory_space<vmem>>, vector<128x128xf32>,
    %c0_i32_8 = arith.constant 0 : i32
    %10 = arith.cmpi eq, %arg1, %c0_i32_8 : i32
    %11 = arith.extui %10 : i1 to i32
    %c0_i32_9 = arith.constant 0 : i32
    %12 = arith.cmpi ne, %11, %c0_i32_9 : i32
    scf.if %12 {
      %c0_10 = arith.constant 0 : index
      %c0_11 = arith.constant 0 : index
      %13 = vector.load %arg5[%c0_10, %c0_11] : memref<128x128xf32, #tpu.memory_space<vmem>>, vector<128x128xf32>
      %c0_12 = arith.constant 0 : index
      %c0_13 = arith.constant 0 : index
      %14 = vector.load %arg4[%c0_12, %c0_13] : memref<128x128xf32, #tpu.memory_space<vmem>>, vector<128x128xf32>
      tpu.vector_store %arg4[%c0_12, %c0_13], %13 {strides = array<i32>} : memref<128x128xf32, #tpu.memory_space<vmem>>, vector<128x128xf32>,
    } else {
    }
    return
  }
  func.func @transform_0(%arg0: i32, %arg1: i32) -> (i32, i32) {
    %c0_i32 = arith.constant 0 : i32
    return %arg0, %arg1 : i32, i32
  }
  func.func @transform_1(%arg0: i32, %arg1: i32) -> (i32, i32) {
    %c0_i32 = arith.constant 0 : i32
    %c0_i32_0 = arith.constant 0 : i32
    return %arg1, %c0_i32 : i32, i32
  }
  func.func @transform_2(%arg0: i32, %arg1: i32) -> (i32, i32) {
    %c0_i32 = arith.constant 0 : i32
    %c0_i32_0 = arith.constant 0 : i32
    return %arg0, %c0_i32 : i32, i32
  }
}

</mosaic_0001>

<llo_original>
// kernel: lightgcn_propagate.3
$region0: #{lightgcn_propagate.3}
  #allocation0 [shape = 'u32[]', space=smem, size = 0x4, offset = 0x4, fixed_abs, tag = 'smem constant byte address 0x4 - core index']
  #allocation1 [shape = 'u32[144,128]{1,0:T(1,128)}', space=vmem, size = 0x12000, scoped, tag = 'internal scratch']
  #allocation2 [shape = 'f32[128,128]{1,0:T(8,128)}', space=vmem, size = 0x10000, scoped, tag = 'scratch operand']
  %s0 = inlined_call_operand.vmem [shape: bf16[128,128], index: 0, kind: input, shape index: {}]
  %s1 = inlined_call_operand.vmem [shape: f32[128,128], index: 1, kind: input, shape index: {}]
  %s2 = inlined_call_operand.vmem [shape: f32[128,128], index: 2, kind: output, shape index: {}]
  %s3 = sld [smem:[#allocation0]]
  $region26: #{lightgcn_propagate.3} parent=0
    _
  %s5 = ssub.s32 1, %s3
  %s6 = scalar_select 0, %s5, %s3
  // Predicated region
  $region2: #{lightgcn_propagate.3} parent=0 // pred_check
    _
  $region3: #{lightgcn_propagate.3} parent=0 // pred_check_branch
    %8 = sbr.rel (0) target = $region5
  $region4: #{lightgcn_propagate.3} parent=0 // pred_region
    _
  $region5: #{lightgcn_propagate.3} parent=0 // pred_fallthru
    _
  // Predicated region
  $region6: #{lightgcn_propagate.3} parent=0 // pred_check
    _
  $region7: #{lightgcn_propagate.3} parent=0 // pred_check_branch
    %10 = sbr.rel (0) target = $region9
  $region8: #{lightgcn_propagate.3} parent=0 // pred_region
    _
  $region9: #{lightgcn_propagate.3} parent=0 // pred_fallthru
    _
  %p11 = scmp.eq.s32.totalorder 0, 0
  // Predicated region
  $region10: #{lightgcn_propagate.3} parent=0 // pred_check
    %p12 = pneg %p11
  $region11: #{lightgcn_propagate.3} parent=0 // pred_check_branch
    %14 = sbr.rel (%p12) target = $region13
  $region12: #{lightgcn_propagate.3} parent=0 // pred_region
    %15 = vst [vmem:[#allocation2] sm:$0xff] 0.0
    %16 = vst [vmem:[#allocation2 + $0x8] sm:$0xff] 0.0
    %17 = vst [vmem:[#allocation2 + $0x10] sm:$0xff] 0.0
    %18 = vst [vmem:[#allocation2 + $0x18] sm:$0xff] 0.0
    %19 = vst [vmem:[#allocation2 + $0x20] sm:$0xff] 0.0
    %20 = vst [vmem:[#allocation2 + $0x28] sm:$0xff] 0.0
    %21 = vst [vmem:[#allocation2 + $0x30] sm:$0xff] 0.0
    %22 = vst [vmem:[#allocation2 + $0x38] sm:$0xff] 0.0
    %23 = vst [vmem:[#allocation2 + $0x40] sm:$0xff] 0.0
    %24 = vst [vmem:[#allocation2 + $0x48] sm:$0xff] 0.0
    %25 = vst [vmem:[#allocation2 + $0x50] sm:$0xff] 0.0
    %26 = vst [vmem:[#allocation2 + $0x58] sm:$0xff] 0.0
    %27 = vst [vmem:[#allocation2 + $0x60] sm:$0xff] 0.0
    %28 = vst [vmem:[#allocation2 + $0x68] sm:$0xff] 0.0
    %29 = vst [vmem:[#allocation2 + $0x70] sm:$0xff] 0.0
    %30 = vst [vmem:[#allocation2 + $0x78] sm:$0xff] 0.0
  $region13: #{lightgcn_propagate.3} parent=0 // pred_fallthru
    _
  %v31 = vld [vmem:[#allocation2] sm:$0xff]
  %v32 = vld [vmem:[#allocation2 + $0x8] sm:$0xff]
  %v33 = vld [vmem:[#allocation2 + $0x10] sm:$0xff]
  %v34 = vld [vmem:[#allocation2 + $0x18] sm:$0xff]
  %v35 = vld [vmem:[#allocation2 + $0x20] sm:$0xff]
  %v36 = vld [vmem:[#allocation2 + $0x28] sm:$0xff]
  %v37 = vld [vmem:[#allocation2 + $0x30] sm:$0xff]
  %v38 = vld [vmem:[#allocation2 + $0x38] sm:$0xff]
  %v39 = vld [vmem:[#allocation2 + $0x40] sm:$0xff]
  %v40 = vld [vmem:[#allocation2 + $0x48] sm:$0xff]
  %v41 = vld [vmem:[#allocation2 + $0x50] sm:$0xff]
  %v42 = vld [vmem:[#allocation2 + $0x58] sm:$0xff]
  %v43 = vld [vmem:[#allocation2 + $0x60] sm:$0xff]
  %v44 = vld [vmem:[#allocation2 + $0x68] sm:$0xff]
  %v45 = vld [vmem:[#allocation2 + $0x70] sm:$0xff]
  %v46 = vld [vmem:[#allocation2 + $0x78] sm:$0xff]
  %v47 = vld [vmem:[%s0] sm:$0xf]
  %v48 = vld [vmem:[%s0 + $0x4] sm:$0xf]
  %v49 = vld [vmem:[%s0 + $0x8] sm:$0xf]
  %v50 = vld [vmem:[%s0 + $0xc] sm:$0xf]
  %v51 = vld [vmem:[%s0 + $0x10] sm:$0xf]
  %v52 = vld [vmem:[%s0 + $0x14] sm:$0xf]
  %v53 = vld [vmem:[%s0 + $0x18] sm:$0xf]
  %v54 = vld [vmem:[%s0 + $0x1c] sm:$0xf]
  %v55 = vld [vmem:[%s0 + $0x20] sm:$0xf]
  %v56 = vld [vmem:[%s0 + $0x24] sm:$0xf]
  %v57 = vld [vmem:[%s0 + $0x28] sm:$0xf]
  %v58 = vld [vmem:[%s0 + $0x2c] sm:$0xf]
  %v59 = vld [vmem:[%s0 + $0x30] sm:$0xf]
  %v60 = vld [vmem:[%s0 + $0x34] sm:$0xf]
  %v61 = vld [vmem:[%s0 + $0x38] sm:$0xf]
  %v62 = vld [vmem:[%s0 + $0x3c] sm:$0xf]
  %v63 = vunpack.c.l.bf16 %v47
  %v64 = vunpack.c.l.bf16 %v48
  %v65 = vunpack.c.l.bf16 %v49
  %v66 = vunpack.c.l.bf16 %v50
  %v67 = vunpack.c.l.bf16 %v51
  %v68 = vunpack.c.l.bf16 %v52
  %v69 = vunpack.c.l.bf16 %v53
  %v70 = vunpack.c.l.bf16 %v54
  %v71 = vunpack.c.l.bf16 %v55
  %v72 = vunpack.c.l.bf16 %v56
  %v73 = vunpack.c.l.bf16 %v57
  %v74 = vunpack.c.l.bf16 %v58
  %v75 = vunpack.c.l.bf16 %v59
  %v76 = vunpack.c.l.bf16 %v60
  %v77 = vunpack.c.l.bf16 %v61
  %v78 = vunpack.c.l.bf16 %v62
  %v79 = vld [vmem:[%s1] sm:$0xff]
  %v80 = vld [vmem:[%s1 + $0x8] sm:$0xff]
  %v81 = vld [vmem:[%s1 + $0x10] sm:$0xff]
  %v82 = vld [vmem:[%s1 + $0x18] sm:$0xff]
  %v83 = vld [vmem:[%s1 + $0x20] sm:$0xff]
  %v84 = vld [vmem:[%s1 + $0x28] sm:$0xff]
  %v85 = vld [vmem:[%s1 + $0x30] sm:$0xff]
  %v86 = vld [vmem:[%s1 + $0x38] sm:$0xff]
  %v87 = vld [vmem:[%s1 + $0x40] sm:$0xff]
  %v88 = vld [vmem:[%s1 + $0x48] sm:$0xff]
  %v89 = vld [vmem:[%s1 + $0x50] sm:$0xff]
  %v90 = vld [vmem:[%s1 + $0x58] sm:$0xff]
  %v91 = vld [vmem:[%s1 + $0x60] sm:$0xff]
  %v92 = vld [vmem:[%s1 + $0x68] sm:$0xff]
  %v93 = vld [vmem:[%s1 + $0x70] sm:$0xff]
  %v94 = vld [vmem:[%s1 + $0x78] sm:$0xff]
  %95 = vmatprep.subr.mxu0 0.0
  %96 = vmatpush1.msra.mxu0 %v79
  %97 = vmatprep.subr.mxu0 0.0
  %98 = vmatpush1.msra.mxu0 %v80
  %99 = vmatprep.subr.mxu0 0.0
  %100 = vmatpush1.msra.mxu0 %v81
  %101 = vmatprep.subr.mxu0 0.0
  %102 = vmatpush1.msra.mxu0 %v82
  %103 = vmatprep.subr.mxu0 0.0
  %104 = vmatpush1.msra.mxu0 %v83
  %105 = vmatprep.subr.mxu0 0.0
  %106 = vmatpush1.msra.mxu0 %v84
  %107 = vmatprep.subr.mxu0 0.0
  %108 = vmatpush1.msra.mxu0 %v85
  %109 = vmatprep.subr.mxu0 0.0
  %110 = vmatpush1.msra.mxu0 %v86
  %111 = vmatprep.subr.mxu0 0.0
  %112 = vmatpush1.msra.mxu0 %v87
  %113 = vmatprep.subr.mxu0 0.0
  %114 = vmatpush1.msra.mxu0 %v88
  %115 = vmatprep.subr.mxu0 0.0
  %116 = vmatpush1.msra.mxu0 %v89
  %117 = vmatprep.subr.mxu0 0.0
  %118 = vmatpush1.msra.mxu0 %v90
  %119 = vmatprep.subr.mxu0 0.0
  %120 = vmatpush1.msra.mxu0 %v91
  %121 = vmatprep.subr.mxu0 0.0
  %122 = vmatpush1.msra.mxu0 %v92
  %123 = vmatprep.subr.mxu0 0.0
  %124 = vmatpush1.msra.mxu0 %v93
  %125 = vmatprep.subr.mxu0 0.0
  %126 = vmatpush1.msra.mxu0 %v94
  %127 = vmatprep.subr.mxu0 0.0
  %128 = vmatpush1.msra.mxu0 0.0
  %129 = vmatprep.subr.mxu0 0.0
  %130 = vmatpush1.msra.mxu0 0.0
  %131 = vmatprep.subr.mxu0 0.0
  %132 = vmatpush1.msra.mxu0 0.0
  %133 = vmatprep.subr.mxu0 0.0
  %134 = vmatpush1.msra.mxu0 0.0
  %135 = vmatprep.subr.mxu0 0.0
  %136 = vmatpush1.msra.mxu0 0.0
  %137 = vmatprep.subr.mxu0 0.0
  %138 = vmatpush1.msra.mxu0 0.0
  %139 = vmatprep.subr.mxu0 0.0
  %140 = vmatpush1.msra.mxu0 0.0
  %141 = vmatprep.subr.mxu0 0.0
  %142 = vmatpush1.msra.mxu0 0.0
  %143 = vmatprep.subr.mxu0 0.0
  %144 = vmatpush1.msra.mxu0 0.0
  %145 = vmatprep.subr.mxu0 0.0
  %146 = vmatpush1.msra.mxu0 0.0
  %147 = vmatprep.subr.mxu0 0.0
  %148 = vmatpush1.msra.mxu0 0.0
  %149 = vmatprep.subr.mxu0 0.0
  %150 = vmatpush1.msra.mxu0 0.0
  %151 = vmatprep.subr.mxu0 0.0
  %152 = vmatpush1.msra.mxu0 0.0
  %153 = vmatprep.subr.mxu0 0.0
  %154 = vmatpush1.msra.mxu0 0.0
  %155 = vmatprep.subr.mxu0 0.0
  %156 = vmatpush1.msra.mxu0 0.0
  %157 = vmatprep.subr.mxu0 0.0
  %158 = vmatpush1.msra.mxu0 0.0
  %159 = vmatprep.mubr.f32.mxu0 0.0
  %160 = vmatmul.mubr.f32.gmra.mrb[0].mxu0 %v63
  %v161 = vpop.f32.mrb[0].mxu0
  %v162 = vadd.f32 0.0, %v161
  %v163 = vpop.f32.mrb[0].mxu0
  %164 = vmatprep.mubr.f32.mxu0 0.0
  %165 = vmatmul.mubr.f32.gmra.mrb[0].mxu0 %v64
  %v166 = vpop.f32.mrb[0].mxu0
  %v167 = vadd.f32 0.0, %v166
  %v168 = vpop.f32.mrb[0].mxu0
  %169 = vmatprep.mubr.f32.mxu0 0.0
  %170 = vmatmul.mubr.f32.gmra.mrb[0].mxu0 %v65
  %v171 = vpop.f32.mrb[0].mxu0
  %v172 = vadd.f32 0.0, %v171
  %v173 = vpop.f32.mrb[0].mxu0
  %174 = vmatprep.mubr.f32.mxu0 0.0
  %175 = vmatmul.mubr.f32.gmra.mrb[0].mxu0 %v66
  %v176 = vpop.f32.mrb[0].mxu0
  %v177 = vadd.f32 0.0, %v176
  %v178 = vpop.f32.mrb[0].mxu0
  %179 = vmatprep.mubr.f32.mxu0 0.0
  %180 = vmatmul.mubr.f32.gmra.mrb[0].mxu0 %v67
  %v181 = vpop.f32.mrb[0].mxu0
  %v182 = vadd.f32 0.0, %v181
  %v183 = vpop.f32.mrb[0].mxu0
  %184 = vmatprep.mubr.f32.mxu0 0.0
  %185 = vmatmul.mubr.f32.gmra.mrb[0].mxu0 %v68
  %v186 = vpop.f32.mrb[0].mxu0
  %v187 = vadd.f32 0.0, %v186
  %v188 = vpop.f32.mrb[0].mxu0
  %189 = vmatprep.mubr.f32.mxu0 0.0
  %190 = vmatmul.mubr.f32.gmra.mrb[0].mxu0 %v69
  %v191 = vpop.f32.mrb[0].mxu0
  %v192 = vadd.f32 0.0, %v191
  %v193 = vpop.f32.mrb[0].mxu0
  %194 = vmatprep.mubr.f32.mxu0 0.0
  %195 = vmatmul.mubr.f32.gmra.mrb[0].mxu0 %v70
  %v196 = vpop.f32.mrb[0].mxu0
  %v197 = vadd.f32 0.0, %v196
  %v198 = vpop.f32.mrb[0].mxu0
  %199 = vmatprep.mubr.f32.mxu0 0.0
  %200 = vmatmul.mubr.f32.gmra.mrb[0].mxu0 %v71
  %v201 = vpop.f32.mrb[0].mxu0
  %v202 = vadd.f32 0.0, %v201
  %v203 = vpop.f32.mrb[0].mxu0
  %204 = vmatprep.mubr.f32.mxu0 0.0
  %205 = vmatmul.mubr.f32.gmra.mrb[0].mxu0 %v72
  %v206 = vpop.f32.mrb[0].mxu0
  %v207 = vadd.f32 0.0, %v206
  %v208 = vpop.f32.mrb[0].mxu0
  %209 = vmatprep.mubr.f32.mxu0 0.0
  %210 = vmatmul.mubr.f32.gmra.mrb[0].mxu0 %v73
  %v211 = vpop.f32.mrb[0].mxu0
  %v212 = vadd.f32 0.0, %v211
  %v213 = vpop.f32.mrb[0].mxu0
  %214 = vmatprep.mubr.f32.mxu0 0.0
  %215 = vmatmul.mubr.f32.gmra.mrb[0].mxu0 %v74
  %v216 = vpop.f32.mrb[0].mxu0
  %v217 = vadd.f32 0.0, %v216
  %v218 = vpop.f32.mrb[0].mxu0
  %219 = vmatprep.mubr.f32.mxu0 0.0
  %220 = vmatmul.mubr.f32.gmra.mrb[0].mxu0 %v75
  %v221 = vpop.f32.mrb[0].mxu0
  %v222 = vadd.f32 0.0, %v221
  %v223 = vpop.f32.mrb[0].mxu0
  %224 = vmatprep.mubr.f32.mxu0 0.0
  %225 = vmatmul.mubr.f32.gmra.mrb[0].mxu0 %v76
  %v226 = vpop.f32.mrb[0].mxu0
  %v227 = vadd.f32 0.0, %v226
  %v228 = vpop.f32.mrb[0].mxu0
  %229 = vmatprep.mubr.f32.mxu0 0.0
  %230 = vmatmul.mubr.f32.gmra.mrb[0].mxu0 %v77
  %v231 = vpop.f32.mrb[0].mxu0
  %v232 = vadd.f32 0.0, %v231
  %v233 = vpop.f32.mrb[0].mxu0
  %234 = vmatprep.mubr.f32.mxu0 0.0
  %235 = vmatmul.mubr.f32.gmra.mrb[0].mxu0 %v78
  %v236 = vpop.f32.mrb[0].mxu0
  %v237 = vadd.f32 0.0, %v236
  %v238 = vpop.f32.mrb[0].mxu0
  %239 = vdwg.mxu0
  %v240 = vadd.f32 %v31, %v162
  %v241 = vadd.f32 %v32, %v167
  %v242 = vadd.f32 %v33, %v172
  %v243 = vadd.f32 %v34, %v177
  %v244 = vadd.f32 %v35, %v182
  %v245 = vadd.f32 %v36, %v187
  %v246 = vadd.f32 %v37, %v192
  %v247 = vadd.f32 %v38, %v197
  %v248 = vadd.f32 %v39, %v202
  %v249 = vadd.f32 %v40, %v207
  %v250 = vadd.f32 %v41, %v212
  %v251 = vadd.f32 %v42, %v217
  %v252 = vadd.f32 %v43, %v222
  %v253 = vadd.f32 %v44, %v227
  %v254 = vadd.f32 %v45, %v232
  %v255 = vadd.f32 %v46, %v237
  %256 = vst [vmem:[#allocation2] sm:$0xff] %v240
  %257 = vst [vmem:[#allocation2 + $0x8] sm:$0xff] %v241
  %258 = vst [vmem:[#allocation2 + $0x10] sm:$0xff] %v242
  %259 = vst [vmem:[#allocation2 + $0x18] sm:$0xff] %v243
  %260 = vst [vmem:[#allocation2 + $0x20] sm:$0xff] %v244
  %261 = vst [vmem:[#allocation2 + $0x28] sm:$0xff] %v245
  %262 = vst [vmem:[#allocation2 + $0x30] sm:$0xff] %v246
  %263 = vst [vmem:[#allocation2 + $0x38] sm:$0xff] %v247
  %264 = vst [vmem:[#allocation2 + $0x40] sm:$0xff] %v248
  %265 = vst [vmem:[#allocation2 + $0x48] sm:$0xff] %v249
  %266 = vst [vmem:[#allocation2 + $0x50] sm:$0xff] %v250
  %267 = vst [vmem:[#allocation2 + $0x58] sm:$0xff] %v251
  %268 = vst [vmem:[#allocation2 + $0x60] sm:$0xff] %v252
  %269 = vst [vmem:[#allocation2 + $0x68] sm:$0xff] %v253
  %270 = vst [vmem:[#allocation2 + $0x70] sm:$0xff] %v254
  %271 = vst [vmem:[#allocation2 + $0x78] sm:$0xff] %v255
  // Predicated region
  $region14: #{lightgcn_propagate.3} parent=0 // pred_check
    %p272 = pneg %p11
  $region15: #{lightgcn_propagate.3} parent=0 // pred_check_branch
    %274 = sbr.rel (%p272) target = $region17
  $region16: #{lightgcn_propagate.3} parent=0 // pred_region
    %v275 = vld [vmem:[#allocation2] sm:$0xff]
    %v276 = vld [vmem:[#allocation2 + $0x8] sm:$0xff]
    %v277 = vld [vmem:[#allocation2 + $0x10] sm:$0xff]
    %v278 = vld [vmem:[#allocation2 + $0x18] sm:$0xff]
    %v279 = vld [vmem:[#allocation2 + $0x20] sm:$0xff]
    %v280 = vld [vmem:[#allocation2 + $0x28] sm:$0xff]
    %v281 = vld [vmem:[#allocation2 + $0x30] sm:$0xff]
    %v282 = vld [vmem:[#allocation2 + $0x38] sm:$0xff]
    %v283 = vld [vmem:[#allocation2 + $0x40] sm:$0xff]
    %v284 = vld [vmem:[#allocation2 + $0x48] sm:$0xff]
    %v285 = vld [vmem:[#allocation2 + $0x50] sm:$0xff]
    %v286 = vld [vmem:[#allocation2 + $0x58] sm:$0xff]
    %v287 = vld [vmem:[#allocation2 + $0x60] sm:$0xff]
    %v288 = vld [vmem:[#allocation2 + $0x68] sm:$0xff]
    %v289 = vld [vmem:[#allocation2 + $0x70] sm:$0xff]
    %v290 = vld [vmem:[#allocation2 + $0x78] sm:$0xff]
    %291 = vst [vmem:[%s2] sm:$0xff] %v275
    %292 = vst [vmem:[%s2 + $0x8] sm:$0xff] %v276
    %293 = vst [vmem:[%s2 + $0x10] sm:$0xff] %v277
    %294 = vst [vmem:[%s2 + $0x18] sm:$0xff] %v278
    %295 = vst [vmem:[%s2 + $0x20] sm:$0xff] %v279
    %296 = vst [vmem:[%s2 + $0x28] sm:$0xff] %v280
    %297 = vst [vmem:[%s2 + $0x30] sm:$0xff] %v281
    %298 = vst [vmem:[%s2 + $0x38] sm:$0xff] %v282
    %299 = vst [vmem:[%s2 + $0x40] sm:$0xff] %v283
    %300 = vst [vmem:[%s2 + $0x48] sm:$0xff] %v284
    %301 = vst [vmem:[%s2 + $0x50] sm:$0xff] %v285
    %302 = vst [vmem:[%s2 + $0x58] sm:$0xff] %v286
    %303 = vst [vmem:[%s2 + $0x60] sm:$0xff] %v287
    %304 = vst [vmem:[%s2 + $0x68] sm:$0xff] %v288
    %305 = vst [vmem:[%s2 + $0x70] sm:$0xff] %v289
    %306 = vst [vmem:[%s2 + $0x78] sm:$0xff] %v290
  $region17: #{lightgcn_propagate.3} parent=0 // pred_fallthru
    _
  // Predicated region
  $region18: #{lightgcn_propagate.3} parent=0 // pred_check
    _
  $region19: #{lightgcn_propagate.3} parent=0 // pred_check_branch
    %308 = sbr.rel (0) target = $region21
  $region20: #{lightgcn_propagate.3} parent=0 // pred_region
    _
  $region21: #{lightgcn_propagate.3} parent=0 // pred_fallthru
    _
  // Predicated region
  $region22: #{lightgcn_propagate.3} parent=0 // pred_check
    _
  $region23: #{lightgcn_propagate.3} parent=0 // pred_check_branch
    %310 = sbr.rel (0) target = $region25
  $region24: #{lightgcn_propagate.3} parent=0 // pred_region
    _
  $region25: #{lightgcn_propagate.3} parent=0 // pred_fallthru
    _

</llo_original>
